<compile_context>
chip_gen: v7x
topology: tpu7x:2x2x1
jax: 0.10.0
libtpu: 0.0.40
codegen_flags: <defaults>
</compile_context>

<pallas_src>
import jax
import jax.numpy as jnp
from jax.experimental import pallas as pl
from jax.experimental.pallas import tpu as pltpu

_LANES = 128        # vreg lane width -> lane-dense, unmasked stores
_TILE_ROWS = 1024   # 1024x128 f32 = 512 KiB/buffer; 2x(in+out) = 2 MiB VMEM


def _copy_kernel(theta_ref, out_ref):
    # Pure pass-through of one (tile_rows, 128) lane-dense tile.
    out_ref[...] = theta_ref[...]


def params_forward(theta: jax.Array) -> jax.Array:
    """ParamsBase.forward() as a lane-dense, tiled Pallas identity kernel."""
    orig_shape, orig_dtype = theta.shape, theta.dtype
    n = theta.size

    flat = theta.reshape(-1)

    # Flatten to whole 128-lane rows; when more than one tile is needed, pad
    # rows to a multiple of the tile so the block stays (8,128)-legal.
    rows = pl.cdiv(n, _LANES)
    tile_rows = min(rows, _TILE_ROWS)
    padded_rows = pl.cdiv(rows, tile_rows) * tile_rows
    padded_n = padded_rows * _LANES
    if padded_n != n:
        flat = jnp.pad(flat, (0, padded_n - n))
    slab = flat.reshape(padded_rows, _LANES)

    out = pl.pallas_call(
        _copy_kernel,
        out_shape=jax.ShapeDtypeStruct((padded_rows, _LANES), orig_dtype),
        grid=(padded_rows // tile_rows,),
        in_specs=[pl.BlockSpec((tile_rows, _LANES), lambda i: (i, 0))],
        out_specs=pl.BlockSpec((tile_rows, _LANES), lambda i: (i, 0)),
        # Identity copy: let the output alias the input slab's HBM buffer
        # whenever XLA can share it (no second allocation / writeback).
        input_output_aliases={0: 0},
        compiler_params=pltpu.CompilerParams(
            dimension_semantics=("parallel",)),  # shards rows across v7x's 2 TCs
    )(slab)

    out = out.reshape(-1)
    if padded_n != n:
        out = out[:n]
    return out.reshape(orig_shape)


class ParamsBase:
    """
    JAX/Pallas port of the abstract ParamsBase parameter container.

    The reference PyTorch __init__ registers no parameters and forward()
    raises NotImplementedError; we instantiate the minimal concrete variant
    (a stored theta tensor returned by forward) so there is a real kernel to
    execute.
    """

    def __init__(self, batch: int = 2, channels: int = 4, length: int = 16,
                 key: jax.Array | None = None):
        if key is None:
            key = jax.random.PRNGKey(0)
        self.theta = jax.random.normal(key, (batch, channels, length),
                                       dtype=jnp.float32)

    @property
    def shape(self):
        # Static metadata only — no kernel launch / HBM round-trip.
        return self.theta.shape

    def forward(self) -> jax.Array:
        return params_forward(self.theta)

    def __call__(self) -> jax.Array:
        return self.forward()

    def rebatch(self, input):
        # TODO(synk): abstract in the reference (raises NotImplementedError); no concrete semantics to port.
        raise NotImplementedError('Rebatch function not implemented.')

    def reset(self, input):
        # TODO(synk): abstract in the reference (raises NotImplementedError); no concrete semantics to port.
        raise NotImplementedError('Reset function not implemented.')

    def prior_nll(self):
        # TODO(synk): abstract in the reference (raises NotImplementedError); no concrete semantics to port.
        raise NotImplementedError('Prior Negative Log-Likelihood not implemented.')


if __name__ == "__main__":
    key = jax.random.PRNGKey(0)
    params = ParamsBase(batch=2, channels=4, length=16, key=key)

    out = params()
    out = jax.block_until_ready(out)

    # Correctness checks against the trivial pure-JAX reference (identity).
    assert out.shape == (2, 4, 16)
    assert out.dtype == jnp.float32
    assert bool(jnp.allclose(out, params.theta)), "Pallas forward mismatch"
    assert params.shape == (2, 4, 16)

    # Exercise the ragged (non-128-multiple) flatten/pad path as well.
    theta2 = jax.random.normal(jax.random.PRNGKey(1), (3, 4, 50),
                               dtype=jnp.float32)
    out2 = jax.block_until_ready(params_forward(theta2))
    assert out2.shape == theta2.shape
    assert bool(jnp.allclose(out2, theta2)), "Pallas ragged forward mismatch"

    print("KERNEL_OK")
</pallas_src>

<mosaic_0001>
module attributes {stable_mosaic.version = 11 : i64} {
  func.func @_copy_kernel(%arg0: i32, %arg1: memref<1x128xf32, #tpu.memory_space<vmem>>, %arg2: memref<1x128xf32, #tpu.memory_space<vmem>>) attributes {dimension_semantics = [#tpu.dimension_semantics<parallel>], iteration_bounds = array<i64: 1>, scalar_prefetch = 0 : i64, scratch_operands = 0 : i64, tpu.core_type = #tpu.core_type<tc>, window_params = [{transform_indices = @transform_0, window_bounds = array<i64: 1, 128>}, {transform_indices = @transform_1, window_bounds = array<i64: 1, 128>}]} {
    %c0 = arith.constant 0 : index
    %c0_0 = arith.constant 0 : index
    %0 = vector.load %arg1[%c0, %c0_0] : memref<1x128xf32, #tpu.memory_space<vmem>>, vector<1x128xf32>
    %c0_1 = arith.constant 0 : index
    %c0_2 = arith.constant 0 : index
    %1 = vector.load %arg2[%c0_1, %c0_2] : memref<1x128xf32, #tpu.memory_space<vmem>>, vector<1x128xf32>
    tpu.vector_store %arg2[%c0_1, %c0_2], %0 {strides = array<i32>} : memref<1x128xf32, #tpu.memory_space<vmem>>, vector<1x128xf32>,
    return
  }
  func.func @transform_0(%arg0: i32) -> (i32, i32) {
    %c0_i32 = arith.constant 0 : i32
    %c0_i32_0 = arith.constant 0 : i32
    return %arg0, %c0_i32 : i32, i32
  }
  func.func @transform_1(%arg0: i32) -> (i32, i32) {
    %c0_i32 = arith.constant 0 : i32
    %c0_i32_0 = arith.constant 0 : i32
    return %arg0, %c0_i32 : i32, i32
  }
}

</mosaic_0001>

<llo_original>
// kernel: tpu_custom_call.1
$region0: #{tpu_custom_call.1}
  #allocation0 [shape = 'u32[]', space=smem, size = 0x4, offset = 0x4, fixed_abs, tag = 'smem constant byte address 0x4 - core index']
  #allocation1 [shape = 'u32[144,128]{1,0:T(1,128)}', space=vmem, size = 0x12000, scoped, tag = 'internal scratch']
  %s0 = inlined_call_operand.hbm [shape: f32[1,128], index: 0, kind: input, shape index: {}, may-alias: {0,1}]
  %s1 = inlined_call_operand.hbm [shape: f32[1,128], index: 1, kind: output, shape index: {}, may-alias: {0,1}]
  %s2 = sld [smem:[#allocation0]]
  $region18: #{tpu_custom_call.1} parent=0
    _
  %s4 = ssub.s32 1, %s2
  %s5 = scalar_select 0, %s4, %s2
  $region1: #{tpu_custom_call.1} parent=0
    #allocation2 [shape = 'u8[512]{0}', space=vmem, size = 0x400, scoped, tag = 'input window, operand 0, single buffered']
    #allocation3 [shape = 's32[1]{0}', space=sflag, size = 0x4, scoped, tag = 'scoped memory for tpu_custom_call.1']
    #allocation4 [shape = 's32[1]{0}', space=sflag, size = 0x4, scoped, tag = 'scoped memory for tpu_custom_call.1']
    #allocation5 [shape = 'u8[512]{0}', space=vmem, size = 0x400, scoped, tag = 'output window, operand 0, single buffered']
    %6 = vsyncpa [#allocation3], 0
    %7 = vsyncpa [#allocation4], 0
    // Predicated region
    $region2: #{tpu_custom_call.1} parent=1 // pred_check
      _
    $region3: #{tpu_custom_call.1} parent=1 // pred_check_branch
      %9 = sbr.rel (0) target = $region5
    $region4: #{tpu_custom_call.1} parent=1 // pred_region
      %s11 = ssub.s32 16, 16
      %12 = vsyncadd [#allocation3], %s11
      %s14 = sshll.u32 [#allocation2], 4
      %s15 = int_to_ptr.vmem [resolvable:$true] %s14
      %17 = dma.hbm_to_vmem [thread:$0]  %s0, 16, %s15, [#allocation3]
    $region5: #{tpu_custom_call.1} parent=1 // pred_fallthru
      _
    // Predicated region
    $region6: #{tpu_custom_call.1} parent=1 // pred_check
      _
    $region7: #{tpu_custom_call.1} parent=1 // pred_check_branch
      %19 = sbr.rel (0) target = $region9
    $region8: #{tpu_custom_call.1} parent=1 // pred_region
      %20 = dma.done [#allocation3], 16
    $region9: #{tpu_custom_call.1} parent=1 // pred_fallthru
      _
    %v21 = vld [vmem:[#allocation2] sm:$0x1]
    %22 = vst [vmem:[#allocation5] sm:$0x1] %v21
    // Predicated region
    $region10: #{tpu_custom_call.1} parent=1 // pred_check
      _
    $region11: #{tpu_custom_call.1} parent=1 // pred_check_branch
      %24 = sbr.rel (0) target = $region13
    $region12: #{tpu_custom_call.1} parent=1 // pred_region
      %s26 = ssub.s32 16, 16
      %27 = vsyncadd [#allocation4], %s26
      %s29 = sshll.u32 [#allocation5], 4
      %s30 = int_to_ptr.vmem [resolvable:$true] %s29
      %32 = dma.vmem_to_hbm [thread:$0]  %s30, 16, %s1, [#allocation4]
    $region13: #{tpu_custom_call.1} parent=1 // pred_fallthru
      _
    // Predicated region
    $region14: #{tpu_custom_call.1} parent=1 // pred_check
      _
    $region15: #{tpu_custom_call.1} parent=1 // pred_check_branch
      %34 = sbr.rel (0) target = $region17
    $region16: #{tpu_custom_call.1} parent=1 // pred_region
      %35 = dma.done [#allocation4], 16
    $region17: #{tpu_custom_call.1} parent=1 // pred_fallthru
      _
    %36 = vsyncpa [#allocation3], 1
    %37 = vsyncpa [#allocation4], 1

</llo_original>
